<compile_context>
chip_gen: v7x
topology: tpu7x:2x2x1
jax: 0.10.0
libtpu: 0.0.40
codegen_flags: <defaults>
</compile_context>

<pallas_src>
import functools

import jax
import jax.numpy as jnp
from jax import lax
from jax.experimental import pallas as pl
from jax.experimental.pallas import tpu as pltpu


def _round_up(x, m):
    return ((x + m - 1) // m) * m


def _nll_partial_kernel(pred_ref, tgt_ref, w_ref, num_ref, den_ref, *, rgrp, c):
    """One row-tile of the weighted-NLL reduction.

    pred_ref : (TILE_G, L) log-probs, L = rgrp * c (lane-dense when rgrp > 1)
    tgt_ref  : (TILE_G, rgrp) int32 targets (padded rows hold a value >= L)
    w_ref    : (1, L) f32 class weights, tiled rgrp times
    num_ref  : (1, 1, L) f32 per-lane partial of sum_i w[t_i] * pred[i, t_i]
    den_ref  : (1, 1, L) f32 per-lane partial of sum_i w[t_i]
    """
    pred = pred_ref[...].astype(jnp.float32)         # (TG, L); upcast in-kernel
    tgt = tgt_ref[...]                                # (TG, rgrp) int32
    w = w_ref[...]                                    # (1, L) f32

    tg, lanes = pred.shape
    col = lax.broadcasted_iota(jnp.int32, (tg, lanes), 1)

    # One-hot of the target in the lane-dense layout:
    #   lane = r * c + class  for packed sub-row r in [0, rgrp).
    # Valid targets t in [0, c) only match lanes inside their own group;
    # padded targets (>= lanes) never match any lane.
    match = None
    for r in range(rgrp):
        m_r = col == (tgt[:, r:r + 1] + r * c)        # (TG, L) bool
        match = m_r if match is None else (match | m_r)

    # Select (not multiply) so garbage/NaN in padded pred rows cannot leak.
    ws = jnp.where(match, w, 0.0)                     # weight[target] at target lane
    # Sublane (axis 0) reductions only; no per-tile lane reduce.
    num_ref[0] = jnp.sum(ws * pred, axis=0, keepdims=True)   # (1, L)
    den_ref[0] = jnp.sum(ws, axis=0, keepdims=True)           # (1, L)


def nll_loss_pallas(pred, target, trans_feat, weight):
    """Weighted NLL loss (mean reduction), matching F.nll_loss semantics.

    pred:       (N, C) float32/bfloat16 log-probabilities
    target:     (N,)   integer class indices in [0, C)
    trans_feat: unused (kept for signature parity with the PyTorch module)
    weight:     (C,)   per-class weights
    returns:    scalar float32
    """
    del trans_feat  # unused by get_loss.forward
    n, c = pred.shape
    target = target.astype(jnp.int32)
    weight = weight.astype(jnp.float32)

    # ---- lane-dense layout (no class padding ever) -------------------------
    if c <= 128 and 128 % c == 0:
        rgrp = 128 // c          # pack rgrp rows per 128-lane group (free reshape)
    else:
        rgrp = 1                 # keep original width; avoids a pad copy of pred
    lanes = rgrp * c

    # ---- row tiling ---------------------------------------------------------
    itemsize = jnp.dtype(pred.dtype).itemsize
    g_total = pl.cdiv(n, rgrp)
    # Target ~1 MiB of pred per tile (double-buffered -> ~2 MiB VMEM).
    desired_g = max(8, ((1 << 20) // (lanes * itemsize)) // 8 * 8)
    if g_total <= desired_g:
        tile_g = g_total                              # full-dim block (exempt from /8)
        num_tiles = 1
    else:
        num_tiles = pl.cdiv(g_total, desired_g)       # balance tiles to limit padding
        tile_g = _round_up(pl.cdiv(g_total, num_tiles), 8)
    g_padded = tile_g * num_tiles
    n_padded = g_padded * rgrp

    # Pad rows only if needed; padded rows get an out-of-range target.
    if n_padded != n:
        pred = jnp.pad(pred, ((0, n_padded - n), (0, 0)))
        target = jnp.pad(target, (0, n_padded - n), constant_values=lanes)

    pred2 = pred.reshape(g_padded, lanes)             # contiguous row-major -> free
    tgt2 = target.reshape(g_padded, rgrp)
    w_lane = jnp.tile(weight, rgrp).reshape(1, lanes)  # tiny

    kernel = functools.partial(_nll_partial_kernel, rgrp=rgrp, c=c)

    num_part, den_part = pl.pallas_call(
        kernel,
        out_shape=(jax.ShapeDtypeStruct((num_tiles, 1, lanes), jnp.float32),
                   jax.ShapeDtypeStruct((num_tiles, 1, lanes), jnp.float32)),
        grid=(num_tiles,),
        in_specs=[
            pl.BlockSpec((tile_g, lanes), lambda i: (i, 0)),
            pl.BlockSpec((tile_g, rgrp), lambda i: (i, 0)),
            pl.BlockSpec((1, lanes), lambda i: (0, 0)),
        ],
        out_specs=(
            pl.BlockSpec((1, 1, lanes), lambda i: (i, 0, 0)),
            pl.BlockSpec((1, 1, lanes), lambda i: (i, 0, 0)),
        ),
        compiler_params=pltpu.CompilerParams(
            dimension_semantics=("parallel",)),       # v7x: shard tiles over both TCs
    )(pred2, tgt2, w_lane)

    # Tiny final reduction + divide in the wrapper.
    num = jnp.sum(num_part)
    den = jnp.sum(den_part)   # den == 0 (all-zero weights) -> NaN, matching PyTorch
    return -(num / den)


if __name__ == "__main__":
    key = jax.random.PRNGKey(0)
    k1, k2, k3, k4 = jax.random.split(key, 4)

    N, C = 32, 16          # small shapes: batch of samples, num_classes
    logits = jax.random.normal(k1, (N, C), dtype=jnp.float32)
    pred = jax.nn.log_softmax(logits, axis=-1)        # pointnet2 feeds log-probs
    target = jax.random.randint(k2, (N,), 0, C, dtype=jnp.int32)
    trans_feat = jax.random.normal(k3, (N, 4, 4), dtype=jnp.float32)  # unused
    weight = jax.random.uniform(k4, (C,), dtype=jnp.float32) + 0.5

    loss = nll_loss_pallas(pred, target, trans_feat, weight)
    loss = jax.block_until_ready(loss)

    # Pure-JAX reference check of weighted NLL (mean reduction).
    w_t = weight[target]
    ref = -jnp.sum(w_t * pred[jnp.arange(N), target]) / jnp.sum(w_t)
    assert jnp.allclose(loss, ref, rtol=1e-5, atol=1e-5), (loss, ref)

    print("KERNEL_OK")
</pallas_src>

<mosaic_0001>
module attributes {stable_mosaic.version = 11 : i64} {
  func.func @_nll_partial_kernel(%arg0: i32, %arg1: memref<4x128xf32, #tpu.memory_space<vmem>>, %arg2: memref<4x8xi32, #tpu.memory_space<vmem>>, %arg3: memref<1x128xf32, #tpu.memory_space<vmem>>, %arg4: memref<1x1x128xf32, #tpu.memory_space<vmem>>, %arg5: memref<1x1x128xf32, #tpu.memory_space<vmem>>) attributes {dimension_semantics = [#tpu.dimension_semantics<parallel>], iteration_bounds = array<i64: 1>, scalar_prefetch = 0 : i64, scratch_operands = 0 : i64, tpu.core_type = #tpu.core_type<tc>, window_params = [{transform_indices = @transform_0, window_bounds = array<i64: 4, 128>}, {transform_indices = @transform_1, window_bounds = array<i64: 4, 8>}, {pipeline_mode = #tpu.pipeline_mode<synchronous>, transform_indices = @transform_2, window_bounds = array<i64: 1, 128>}, {transform_indices = @transform_3, window_bounds = array<i64: 1, 1, 128>}, {transform_indices = @transform_4, window_bounds = array<i64: 1, 1, 128>}]} {
    %c0 = arith.constant 0 : index
    %c0_0 = arith.constant 0 : index
    %0 = vector.load %arg1[%c0, %c0_0] : memref<4x128xf32, #tpu.memory_space<vmem>>, vector<4x128xf32>
    %c0_1 = arith.constant 0 : index
    %c0_2 = arith.constant 0 : index
    %1 = vector.load %arg2[%c0_1, %c0_2] : memref<4x8xi32, #tpu.memory_space<vmem>>, vector<4x8xi32>
    %c0_3 = arith.constant 0 : index
    %c0_4 = arith.constant 0 : index
    %2 = vector.load %arg3[%c0_3, %c0_4] : memref<1x128xf32, #tpu.memory_space<vmem>>, vector<1x128xf32>
    %3 = tpu.iota {dimensions = array<i32: 1>} : vector<4x128xi32>
    %4 = vector.extract_strided_slice %1 {offsets = [0, 0], sizes = [4, 1], strides = [1, 1]} : vector<4x8xi32> to vector<4x1xi32>
    %c0_i32 = arith.constant 0 : i32
    %5 = vector.broadcast %c0_i32 : i32 to vector<4x1xi32>
    %6 = arith.addi %4, %5 : vector<4x1xi32>
    %7 = vector.broadcast %6 : vector<4x1xi32> to vector<4x128xi32>
    %8 = arith.cmpi eq, %3, %7 : vector<4x128xi32>
    %9 = vector.extract_strided_slice %1 {offsets = [0, 1], sizes = [4, 1], strides = [1, 1]} : vector<4x8xi32> to vector<4x1xi32>
    %c16_i32 = arith.constant 16 : i32
    %10 = vector.broadcast %c16_i32 : i32 to vector<4x1xi32>
    %11 = arith.addi %9, %10 : vector<4x1xi32>
    %12 = vector.broadcast %11 : vector<4x1xi32> to vector<4x128xi32>
    %13 = arith.cmpi eq, %3, %12 : vector<4x128xi32>
    %14 = arith.ori %8, %13 : vector<4x128xi1>
    %15 = vector.extract_strided_slice %1 {offsets = [0, 2], sizes = [4, 1], strides = [1, 1]} : vector<4x8xi32> to vector<4x1xi32>
    %c32_i32 = arith.constant 32 : i32
    %16 = vector.broadcast %c32_i32 : i32 to vector<4x1xi32>
    %17 = arith.addi %15, %16 : vector<4x1xi32>
    %18 = vector.broadcast %17 : vector<4x1xi32> to vector<4x128xi32>
    %19 = arith.cmpi eq, %3, %18 : vector<4x128xi32>
    %20 = arith.ori %14, %19 : vector<4x128xi1>
    %21 = vector.extract_strided_slice %1 {offsets = [0, 3], sizes = [4, 1], strides = [1, 1]} : vector<4x8xi32> to vector<4x1xi32>
    %c48_i32 = arith.constant 48 : i32
    %22 = vector.broadcast %c48_i32 : i32 to vector<4x1xi32>
    %23 = arith.addi %21, %22 : vector<4x1xi32>
    %24 = vector.broadcast %23 : vector<4x1xi32> to vector<4x128xi32>
    %25 = arith.cmpi eq, %3, %24 : vector<4x128xi32>
    %26 = arith.ori %20, %25 : vector<4x128xi1>
    %27 = vector.extract_strided_slice %1 {offsets = [0, 4], sizes = [4, 1], strides = [1, 1]} : vector<4x8xi32> to vector<4x1xi32>
    %c64_i32 = arith.constant 64 : i32
    %28 = vector.broadcast %c64_i32 : i32 to vector<4x1xi32>
    %29 = arith.addi %27, %28 : vector<4x1xi32>
    %30 = vector.broadcast %29 : vector<4x1xi32> to vector<4x128xi32>
    %31 = arith.cmpi eq, %3, %30 : vector<4x128xi32>
    %32 = arith.ori %26, %31 : vector<4x128xi1>
    %33 = vector.extract_strided_slice %1 {offsets = [0, 5], sizes = [4, 1], strides = [1, 1]} : vector<4x8xi32> to vector<4x1xi32>
    %c80_i32 = arith.constant 80 : i32
    %34 = vector.broadcast %c80_i32 : i32 to vector<4x1xi32>
    %35 = arith.addi %33, %34 : vector<4x1xi32>
    %36 = vector.broadcast %35 : vector<4x1xi32> to vector<4x128xi32>
    %37 = arith.cmpi eq, %3, %36 : vector<4x128xi32>
    %38 = arith.ori %32, %37 : vector<4x128xi1>
    %39 = vector.extract_strided_slice %1 {offsets = [0, 6], sizes = [4, 1], strides = [1, 1]} : vector<4x8xi32> to vector<4x1xi32>
    %c96_i32 = arith.constant 96 : i32
    %40 = vector.broadcast %c96_i32 : i32 to vector<4x1xi32>
    %41 = arith.addi %39, %40 : vector<4x1xi32>
    %42 = vector.broadcast %41 : vector<4x1xi32> to vector<4x128xi32>
    %43 = arith.cmpi eq, %3, %42 : vector<4x128xi32>
    %44 = arith.ori %38, %43 : vector<4x128xi1>
    %45 = vector.extract_strided_slice %1 {offsets = [0, 7], sizes = [4, 1], strides = [1, 1]} : vector<4x8xi32> to vector<4x1xi32>
    %c112_i32 = arith.constant 112 : i32
    %46 = vector.broadcast %c112_i32 : i32 to vector<4x1xi32>
    %47 = arith.addi %45, %46 : vector<4x1xi32>
    %48 = vector.broadcast %47 : vector<4x1xi32> to vector<4x128xi32>
    %49 = arith.cmpi eq, %3, %48 : vector<4x128xi32>
    %50 = arith.ori %44, %49 : vector<4x128xi1>
    %cst = arith.constant 0.000000e+00 : f32
    %51 = vector.shape_cast %2 : vector<1x128xf32> to vector<1x128xf32>
    %52 = vector.broadcast %51 : vector<1x128xf32> to vector<4x128xf32>
    %53 = vector.broadcast %cst : f32 to vector<4x128xf32>
    %54 = arith.select %50, %52, %53 : vector<4x128xi1>, vector<4x128xf32>
    %55 = arith.mulf %54, %0 : vector<4x128xf32>
    %cst_5 = arith.constant dense<0.000000e+00> : vector<128xf32>
    %56 = vector.multi_reduction <add>, %55, %cst_5 [0] : vector<4x128xf32> to vector<128xf32>
    %57 = vector.shape_cast %56 : vector<128xf32> to vector<1x128xf32>
    %c0_6 = arith.constant 0 : index
    %c0_7 = arith.constant 0 : index
    %c0_8 = arith.constant 0 : index
    %58 = vector.load %arg4[%c0_6, %c0_7, %c0_8] : memref<1x1x128xf32, #tpu.memory_space<vmem>>, vector<1x1x128xf32>
    %59 = vector.shape_cast %58 : vector<1x1x128xf32> to vector<1x128xf32>
    %60 = vector.shape_cast %57 : vector<1x128xf32> to vector<1x1x128xf32>
    tpu.vector_store %arg4[%c0_6, %c0_7, %c0_8], %60 {strides = array<i32>} : memref<1x1x128xf32, #tpu.memory_space<vmem>>, vector<1x1x128xf32>,
    %cst_9 = arith.constant dense<0.000000e+00> : vector<128xf32>
    %61 = vector.multi_reduction <add>, %54, %cst_9 [0] : vector<4x128xf32> to vector<128xf32>
    %62 = vector.shape_cast %61 : vector<128xf32> to vector<1x128xf32>
    %c0_10 = arith.constant 0 : index
    %c0_11 = arith.constant 0 : index
    %c0_12 = arith.constant 0 : index
    %63 = vector.load %arg5[%c0_10, %c0_11, %c0_12] : memref<1x1x128xf32, #tpu.memory_space<vmem>>, vector<1x1x128xf32>
    %64 = vector.shape_cast %63 : vector<1x1x128xf32> to vector<1x128xf32>
    %65 = vector.shape_cast %62 : vector<1x128xf32> to vector<1x1x128xf32>
    tpu.vector_store %arg5[%c0_10, %c0_11, %c0_12], %65 {strides = array<i32>} : memref<1x1x128xf32, #tpu.memory_space<vmem>>, vector<1x1x128xf32>,
    return
  }
  func.func @transform_0(%arg0: i32) -> (i32, i32) {
    %c0_i32 = arith.constant 0 : i32
    %c0_i32_0 = arith.constant 0 : i32
    return %arg0, %c0_i32 : i32, i32
  }
  func.func @transform_1(%arg0: i32) -> (i32, i32) {
    %c0_i32 = arith.constant 0 : i32
    %c0_i32_0 = arith.constant 0 : i32
    return %arg0, %c0_i32 : i32, i32
  }
  func.func @transform_2(%arg0: i32) -> (i32, i32) {
    %c0_i32 = arith.constant 0 : i32
    %c0_i32_0 = arith.constant 0 : i32
    %c0_i32_1 = arith.constant 0 : i32
    return %c0_i32, %c0_i32_0 : i32, i32
  }
  func.func @transform_3(%arg0: i32) -> (i32, i32, i32) {
    %c0_i32 = arith.constant 0 : i32
    %c0_i32_0 = arith.constant 0 : i32
    %c0_i32_1 = arith.constant 0 : i32
    return %arg0, %c0_i32, %c0_i32_0 : i32, i32, i32
  }
  func.func @transform_4(%arg0: i32) -> (i32, i32, i32) {
    %c0_i32 = arith.constant 0 : i32
    %c0_i32_0 = arith.constant 0 : i32
    %c0_i32_1 = arith.constant 0 : i32
    return %arg0, %c0_i32, %c0_i32_0 : i32, i32, i32
  }
}

</mosaic_0001>

<llo_original>
// kernel: tpu_custom_call.1
$region0: #{tpu_custom_call.1}
  #allocation0 [shape = 'u32[]', space=smem, size = 0x4, offset = 0x4, fixed_abs, tag = 'smem constant byte address 0x4 - core index']
  #allocation1 [shape = 'u32[144,128]{1,0:T(1,128)}', space=vmem, size = 0x12000, scoped, tag = 'internal scratch']
  %s0 = inlined_call_operand.hbm [shape: f32[4,128], index: 0, kind: input, shape index: {}]
  %s1 = inlined_call_operand.hbm [shape: s32[4,8], index: 1, kind: input, shape index: {}]
  %s2 = inlined_call_operand.vmem [shape: f32[1,128], index: 2, kind: input, shape index: {}]
  %s3 = inlined_call_operand.hbm [shape: f32[1,1,128], index: 3, kind: output, shape index: {0}]
  %s4 = inlined_call_operand.hbm [shape: f32[1,1,128], index: 4, kind: output, shape index: {1}]
  %5 = xla_tuple %s3, %s4
  %s6 = sld [smem:[#allocation0]]
  $region38: #{tpu_custom_call.1} parent=0
    _
  %s8 = ssub.s32 1, %s6
  %s9 = scalar_select 0, %s8, %s6
  $region1: #{tpu_custom_call.1} parent=0
    #allocation2 [shape = 'u8[2048]{0}', space=vmem, size = 0x800, scoped, tag = 'input window, operand 0, single buffered']
    #allocation3 [shape = 's32[1]{0}', space=sflag, size = 0x4, scoped, tag = 'scoped memory for tpu_custom_call.1']
    #allocation4 [shape = 's32[1]{0}', space=sflag, size = 0x4, scoped, tag = 'scoped memory for tpu_custom_call.1']
    #allocation5 [shape = 'u8[2048]{0}', space=vmem, size = 0x800, scoped, tag = 'input window, operand 1, single buffered']
    #allocation6 [shape = 's32[1]{0}', space=sflag, size = 0x4, scoped, tag = 'scoped memory for tpu_custom_call.1']
    #allocation7 [shape = 'u8[512]{0}', space=vmem, size = 0x400, scoped, tag = 'output window, operand 0, single buffered']
    #allocation8 [shape = 'u8[512]{0}', space=vmem, size = 0x400, scoped, tag = 'output window, operand 1, single buffered']
    #allocation9 [shape = 's32[1]{0}', space=sflag, size = 0x4, scoped, tag = 'scoped memory for tpu_custom_call.1']
    %10 = vsyncpa [#allocation3], 0
    %11 = vsyncpa [#allocation6], 0
    %12 = vsyncpa [#allocation4], 0
    %13 = vsyncpa [#allocation9], 0
    // Predicated region
    $region2: #{tpu_custom_call.1} parent=1 // pred_check
      _
    $region3: #{tpu_custom_call.1} parent=1 // pred_check_branch
      %15 = sbr.rel (0) target = $region5
    $region4: #{tpu_custom_call.1} parent=1 // pred_region
      %s17 = ssub.s32 64, 64
      %18 = vsyncadd [#allocation3], %s17
      %s20 = sshll.u32 [#allocation2], 4
      %s21 = int_to_ptr.vmem [resolvable:$true] %s20
      %23 = dma.hbm_to_vmem [thread:$0]  %s0, 64, %s21, [#allocation3]
    $region5: #{tpu_custom_call.1} parent=1 // pred_fallthru
      _
    // Predicated region
    $region6: #{tpu_custom_call.1} parent=1 // pred_check
      _
    $region7: #{tpu_custom_call.1} parent=1 // pred_check_branch
      %25 = sbr.rel (0) target = $region9
    $region8: #{tpu_custom_call.1} parent=1 // pred_region
      %s27 = ssub.s32 64, 64
      %28 = vsyncadd [#allocation6], %s27
      %s30 = sshll.u32 [#allocation5], 4
      %s31 = int_to_ptr.vmem [resolvable:$true] %s30
      %33 = dma.hbm_to_vmem [thread:$0]  %s1, 64, %s31, [#allocation6]
    $region9: #{tpu_custom_call.1} parent=1 // pred_fallthru
      _
    // Predicated region
    $region10: #{tpu_custom_call.1} parent=1 // pred_check
      _
    $region11: #{tpu_custom_call.1} parent=1 // pred_check_branch
      %35 = sbr.rel (0) target = $region13
    $region12: #{tpu_custom_call.1} parent=1 // pred_region
      _
    $region13: #{tpu_custom_call.1} parent=1 // pred_fallthru
      _
    // Predicated region
    $region14: #{tpu_custom_call.1} parent=1 // pred_check
      _
    $region15: #{tpu_custom_call.1} parent=1 // pred_check_branch
      %37 = sbr.rel (0) target = $region17
    $region16: #{tpu_custom_call.1} parent=1 // pred_region
      %38 = dma.done [#allocation3], 64
    $region17: #{tpu_custom_call.1} parent=1 // pred_fallthru
      _
    // Predicated region
    $region18: #{tpu_custom_call.1} parent=1 // pred_check
      _
    $region19: #{tpu_custom_call.1} parent=1 // pred_check_branch
      %40 = sbr.rel (0) target = $region21
    $region20: #{tpu_custom_call.1} parent=1 // pred_region
      %41 = dma.done [#allocation6], 64
    $region21: #{tpu_custom_call.1} parent=1 // pred_fallthru
      _
    %v42 = vld [vmem:[#allocation2] sm:$0xf]
    %v43 = vld [vmem:[#allocation5] sm:$0xf]
    %v44 = vld [vmem:[%s2] sm:$0x1]
    %v45 = vlaneseq
    %v46 = vand.u32 %v45, 127
    %47 = vset.pattern.permute.xlu0 0
    %48 = vperm.xlu0 %47, %v43
    %v49 = vpop.permute.xlu0 %48
    %vm50 = vcmp.eq.s32.totalorder %v46, %v49
    %v51 = vadd.s32 %v43, 16
    %52 = vset.pattern.permute.xlu0 1
    %53 = vperm.xlu0 %52, %v51
    %v54 = vpop.permute.xlu0 %53
    %vm55 = vcmp.eq.s32.totalorder %v46, %v54
    %vm56 = vmor %vm50, %vm55
    %v57 = vadd.s32 %v43, 32
    %58 = vset.pattern.permute.xlu0 2
    %59 = vperm.xlu0 %58, %v57
    %v60 = vpop.permute.xlu0 %59
    %vm61 = vcmp.eq.s32.totalorder %v46, %v60
    %vm62 = vmor %vm56, %vm61
    %v63 = vadd.s32 %v43, 48
    %64 = vset.pattern.permute.xlu0 3
    %65 = vperm.xlu0 %64, %v63
    %v66 = vpop.permute.xlu0 %65
    %vm67 = vcmp.eq.s32.totalorder %v46, %v66
    %vm68 = vmor %vm62, %vm67
    %v69 = vadd.s32 %v43, 64
    %70 = vset.pattern.permute.xlu0 4
    %71 = vperm.xlu0 %70, %v69
    %v72 = vpop.permute.xlu0 %71
    %vm73 = vcmp.eq.s32.totalorder %v46, %v72
    %vm74 = vmor %vm68, %vm73
    %v75 = vadd.s32 %v43, 80
    %76 = vset.pattern.permute.xlu0 5
    %77 = vperm.xlu0 %76, %v75
    %v78 = vpop.permute.xlu0 %77
    %vm79 = vcmp.eq.s32.totalorder %v46, %v78
    %vm80 = vmor %vm74, %vm79
    %v81 = vadd.s32 %v43, 96
    %82 = vset.pattern.permute.xlu0 6
    %83 = vperm.xlu0 %82, %v81
    %v84 = vpop.permute.xlu0 %83
    %vm85 = vcmp.eq.s32.totalorder %v46, %v84
    %vm86 = vmor %vm80, %vm85
    %v87 = vadd.s32 %v43, 112
    %88 = vset.pattern.permute.xlu0 7
    %89 = vperm.xlu0 %88, %v87
    %v90 = vpop.permute.xlu0 %89
    %vm91 = vcmp.eq.s32.totalorder %v46, %v90
    %vm92 = vmor %vm86, %vm91
    %v94 = vlaneseq
    %v95 = vshrl.u32 %v94, 7
    %v96 = vsub.s32 0, %v95
    %v97 = vrot.slane %v44, %v96
    %v99 = vsel %vm92, %v97, 0.0
    %v100 = vmul.f32 %v99, %v42
    %vm101 = vcmask 1043456
    %v102 = vsel %vm101, %v100, 0.0
    %v103 = vrot.slane %v102, 4
    %v104 = vadd.f32 %v102, %v103
    %v105 = vrot.slane %v104, 2
    %v106 = vadd.f32 %v104, %v105
    %v107 = vrot.slane %v106, 1
    %v108 = vadd.f32 %v106, %v107
    %109 = vst [vmem:[#allocation7] sm:$0x1] %v108
    %v110 = vsel %vm101, %v99, 0.0
    %v111 = vrot.slane %v110, 4
    %v112 = vadd.f32 %v110, %v111
    %v113 = vrot.slane %v112, 2
    %v114 = vadd.f32 %v112, %v113
    %v115 = vrot.slane %v114, 1
    %v116 = vadd.f32 %v114, %v115
    %117 = vst [vmem:[#allocation8] sm:$0x1] %v116
    // Predicated region
    $region22: #{tpu_custom_call.1} parent=1 // pred_check
      _
    $region23: #{tpu_custom_call.1} parent=1 // pred_check_branch
      %119 = sbr.rel (0) target = $region25
    $region24: #{tpu_custom_call.1} parent=1 // pred_region
      %s121 = ssub.s32 16, 16
      %122 = vsyncadd [#allocation4], %s121
      %s124 = sshll.u32 [#allocation7], 4
      %s125 = int_to_ptr.vmem [resolvable:$true] %s124
      %127 = dma.vmem_to_hbm [thread:$0]  %s125, 16, %s3, [#allocation4]
    $region25: #{tpu_custom_call.1} parent=1 // pred_fallthru
      _
    // Predicated region
    $region26: #{tpu_custom_call.1} parent=1 // pred_check
      _
    $region27: #{tpu_custom_call.1} parent=1 // pred_check_branch
      %129 = sbr.rel (0) target = $region29
    $region28: #{tpu_custom_call.1} parent=1 // pred_region
      %s131 = ssub.s32 16, 16
      %132 = vsyncadd [#allocation9], %s131
      %s134 = sshll.u32 [#allocation8], 4
      %s135 = int_to_ptr.vmem [resolvable:$true] %s134
      %137 = dma.vmem_to_hbm [thread:$0]  %s135, 16, %s4, [#allocation9]
    $region29: #{tpu_custom_call.1} parent=1 // pred_fallthru
      _
    // Predicated region
    $region30: #{tpu_custom_call.1} parent=1 // pred_check
      _
    $region31: #{tpu_custom_call.1} parent=1 // pred_check_branch
      %139 = sbr.rel (0) target = $region33
    $region32: #{tpu_custom_call.1} parent=1 // pred_region
      %140 = dma.done [#allocation4], 16
    $region33: #{tpu_custom_call.1} parent=1 // pred_fallthru
      _
    // Predicated region
    $region34: #{tpu_custom_call.1} parent=1 // pred_check
      _
    $region35: #{tpu_custom_call.1} parent=1 // pred_check_branch
      %142 = sbr.rel (0) target = $region37
    $region36: #{tpu_custom_call.1} parent=1 // pred_region
      %143 = dma.done [#allocation9], 16
    $region37: #{tpu_custom_call.1} parent=1 // pred_fallthru
      _
    %144 = vsyncpa [#allocation3], 1
    %145 = vsyncpa [#allocation6], 1
    %146 = vsyncpa [#allocation4], 1
    %147 = vsyncpa [#allocation9], 1

</llo_original>
